<compile_context>
chip_gen: v5e
topology: v5e:2x2
jax: 0.10.0
libtpu: 0.0.40
codegen_flags: <defaults>
</compile_context>

<pallas_src>
import jax
import jax.numpy as jnp
from jax import lax
from jax.experimental import pallas as pl
from jax.experimental.pallas import tpu as pltpu


# ---------------------------------------------------------------------------
# Kernel
# ---------------------------------------------------------------------------
def _sse_kernel(x_ref, wconv_ref, bconv_ref, w1_ref, w2_ref, o_ref,
                heat_ref, acc_ref):
    """Grid = (batch tiles [parallel], hidden tiles [arbitrary]).

    x_ref:     (C, TB, HWp) bf16  channel-major input; x_ref[c] is a contiguous slab
    wconv_ref: (C,)         f32   1x1-conv weights (SMEM scalars)
    bconv_ref: (1,)         f32   1x1-conv bias (SMEM scalar)
    w1_ref:    (HWp, TH)    bf16  fc1 weight, pre-transposed (contract on its leading dim)
    w2_ref:    (TH, HWp)    bf16  fc2 weight, pre-transposed
    o_ref:     (TB, HWp)    f32   sigmoid attention map (lane-dense store)
    heat_ref:  (TB, HWp)    bf16  scratch: conv heatmap (computed once per batch tile)
    acc_ref:   (TB, HWp)    f32   scratch: fc2 accumulator over hidden tiles

    NOTE: on a ragged last batch tile the padded rows of the x block are undefined; every
    op here is row-independent and out-of-bounds output rows are dropped, so garbage rows
    are harmless. Keep it that way (do not add cross-row reductions).
    """
    hi = pl.program_id(1)
    nh = pl.num_programs(1)

    @pl.when(hi == 0)
    def _():
        # 1x1 conv to one channel: f32 FMA chain over contiguous per-channel slabs (VPU),
        # SMEM scalar weights -- no strided sublane loads, no cross-sublane reduce.
        C = x_ref.shape[0]
        heat = x_ref[0].astype(jnp.float32) * wconv_ref[0]
        for c in range(1, C):
            heat = heat + x_ref[c].astype(jnp.float32) * wconv_ref[c]
        heat = heat + bconv_ref[0]
        heat_ref[...] = heat.astype(heat_ref.dtype)
        acc_ref[...] = jnp.zeros_like(acc_ref)

    # fc1 tile + ReLU: (TB, HWp) x (HWp, TH) -> (TB, TH)   [MXU, f32 accumulation]
    h = lax.dot_general(
        heat_ref[...], w1_ref[...],
        dimension_numbers=(((1,), (0,)), ((), ())),
        preferred_element_type=jnp.float32)
    h = jnp.maximum(h, 0.0).astype(w2_ref.dtype)

    # fc2 tile: (TB, TH) x (TH, HWp) -> (TB, HWp), accumulated in f32 across hidden tiles.
    acc_ref[...] += lax.dot_general(
        h, w2_ref[...],
        dimension_numbers=(((1,), (0,)), ((), ())),
        preferred_element_type=jnp.float32)

    @pl.when(hi == nh - 1)
    def _():
        # Single lane-dense store of the full (TB, HWp) tile.
        o_ref[...] = jax.nn.sigmoid(acc_ref[...]).astype(o_ref.dtype)


# ---------------------------------------------------------------------------
# Tiling / VMEM planning
# ---------------------------------------------------------------------------
def _round_up(n, m):
    return (n + m - 1) // m * m


def _vmem_capacity_bytes():
    try:
        cap = int(pltpu.get_tpu_info().vmem_capacity_bytes)
        if cap > 0:
            return cap
    except Exception:
        pass
    return 64 << 20  # conservative fallback: v7x per-TensorCore VMEM


def _plan_tiles(B, C, HWp, hidden, budget):
    """VMEM-budget-driven tile selection.

    Returns (tb, th, Hp, resident, footprint_bytes). Every pipelined block is budgeted at
    2 buffers (Pallas default double-buffering); blocks whose index never changes (x over
    the hidden axis, resident weights over the whole grid) are only DMA'd when their block
    index changes, so resident weights are read from HBM exactly once per call.
    """
    # Batch tile: 256 already puts arithmetic intensity past the roofline knee once the
    # weights stop being re-streamed; larger B just becomes more (parallel) grid steps.
    tb = B if B <= 256 else 256

    def batch_bytes(tb_):
        x_b = 2 * C * tb_ * HWp * 2          # bf16 x block, double-buffered
        o_b = 2 * tb_ * HWp * 4              # f32 out block, double-buffered
        s_b = tb_ * HWp * (2 + 4)            # heat (bf16) + acc (f32) scratch
        return x_b + o_b + s_b

    # Shrink tb if the per-batch-tile working set alone busts the budget.
    while tb > 8 and batch_bytes(tb) > budget // 2:
        tb = max(8, tb // 2)

    Hp128 = _round_up(hidden, 128)
    resident_w = 2 * (2 * Hp128 * HWp * 2)   # both bf16 weights, 2 pipeline buffers each
    avail = budget - batch_bytes(tb)

    if resident_w <= avail:
        # Weights VMEM-resident for the whole grid: nh == 1, fetched once.
        # Batch split is then free -> give the "parallel" batch axis >= 2 tiles so v7x's
        # second TensorCore has work (no-op for B < 16 or B > 256, where nb >= 2 anyway).
        if 16 <= B <= 256:
            tb = min(tb, _round_up((B + 1) // 2, 8))
        return tb, Hp128, Hp128, True, batch_bytes(tb) + resident_w

    # Fall back to hidden-axis tiling: double-buffered (HWp, th) + (th, HWp) bf16 tiles.
    # (No batch split here: tiled weights are re-streamed per batch tile, so keep nb low.)
    th = max(128, (avail // (8 * HWp)) // 128 * 128)
    th = min(th, Hp128)
    Hp = _round_up(hidden, th)               # zero-padded hidden units contribute exactly 0
    return tb, th, Hp, False, batch_bytes(tb) + 8 * th * HWp


# ---------------------------------------------------------------------------
# Wrapper
# ---------------------------------------------------------------------------
def sse_forward(x, wconv, bconv, w1, w2):
    """x: (B, C, W, H) NCHW. wconv: (1, C, 1, 1). bconv: (1,).
    w1: (hidden, HW) torch Linear layout. w2: (HW, hidden) torch Linear layout.
    Returns (B, 1, W, H) float32."""
    B, C, W, H = x.shape
    HW = W * H
    hidden = w1.shape[0]
    HWp = _round_up(HW, 128)                 # lane-dense spatial axis

    capacity = _vmem_capacity_bytes()
    budget = (capacity * 3) // 4             # 25% headroom for compiler scratch
    tb, th, Hp, resident, footprint = _plan_tiles(B, C, HWp, hidden, budget)
    nb = pl.cdiv(B, tb)
    nh = Hp // th

    # x -> channel-major (C, B, HWp) bf16: contiguous per-channel slabs, half the HBM read.
    x3 = jnp.transpose(x.reshape(B, C, HW).astype(jnp.bfloat16), (1, 0, 2))
    if HWp != HW:
        x3 = jnp.pad(x3, ((0, 0), (0, 0), (0, HWp - HW)))

    wconv_s = wconv.reshape(C).astype(jnp.float32)       # SMEM scalars
    bconv_s = bconv.reshape(1).astype(jnp.float32)       # SMEM scalar

    # Pre-transpose the weights once (HBM-level), zero-pad to (HWp, Hp) / (Hp, HWp):
    # padded w1 rows (HW) and padded w2 rows (hidden) are zero -> result is exact.
    w1t = jnp.pad(w1.astype(jnp.bfloat16).T, ((0, HWp - HW), (0, Hp - hidden)))
    w2t = jnp.pad(w2.astype(jnp.bfloat16).T, ((0, Hp - hidden), (0, HWp - HW)))

    smem = pl.BlockSpec(memory_space=pltpu.MemorySpace.SMEM)
    if resident:
        # Full weights, constant block index -> DMA'd once for the whole grid.
        w1_spec = pl.BlockSpec((HWp, Hp), lambda b, h: (0, 0))
        w2_spec = pl.BlockSpec((Hp, HWp), lambda b, h: (0, 0))
    else:
        w1_spec = pl.BlockSpec((HWp, th), lambda b, h: (0, h))
        w2_spec = pl.BlockSpec((th, HWp), lambda b, h: (h, 0))

    vmem_limit = int(min(int(capacity * 0.9),
                         max(32 << 20, int(footprint * 1.3) + (4 << 20))))

    out = pl.pallas_call(
        _sse_kernel,
        out_shape=jax.ShapeDtypeStruct((B, HWp), jnp.float32),
        grid=(nb, nh),
        in_specs=[
            pl.BlockSpec((C, tb, HWp), lambda b, h: (0, b, 0)),  # x: constant over hidden axis
            smem,                                                # wconv scalars
            smem,                                                # bconv scalar
            w1_spec,                                             # fc1 weight (pre-transposed)
            w2_spec,                                             # fc2 weight (pre-transposed)
        ],
        out_specs=pl.BlockSpec((tb, HWp), lambda b, h: (b, 0)),
        scratch_shapes=[
            pltpu.VMEM((tb, HWp), jnp.bfloat16),                 # heat scratch
            pltpu.VMEM((tb, HWp), jnp.float32),                  # fc2 accumulator
        ],
        compiler_params=pltpu.CompilerParams(
            dimension_semantics=("parallel", "arbitrary"),
            vmem_limit_bytes=vmem_limit),
    )(x3, wconv_s, bconv_s, w1t, w2t)

    return out[:, :HW].reshape(B, 1, W, H)


# ---------------------------------------------------------------------------
# Pure-JAX reference (mirrors the kernel's bf16 quantization points)
# ---------------------------------------------------------------------------
def sse_reference(x, wconv, bconv, w1, w2):
    B, C, W, H = x.shape
    HW = W * H
    xq = x.reshape(B, C, HW).astype(jnp.bfloat16).astype(jnp.float32)
    heat = (jnp.einsum("bcs,c->bs", xq, wconv.reshape(C).astype(jnp.float32))
            + bconv.reshape(1)[0])
    heat = heat.astype(jnp.bfloat16).astype(jnp.float32)
    w1f = w1.astype(jnp.bfloat16).astype(jnp.float32)
    w2f = w2.astype(jnp.bfloat16).astype(jnp.float32)
    h = jnp.maximum(heat @ w1f.T, 0.0).astype(jnp.bfloat16).astype(jnp.float32)
    y = jax.nn.sigmoid(h @ w2f.T)
    return y.reshape(B, 1, W, H)


if __name__ == "__main__":
    key = jax.random.PRNGKey(0)
    B, C, Wd, Hd = 2, 4, 16, 16
    HW = Wd * Hd
    hidden_ratio = 2
    hidden = HW // hidden_ratio

    k_x, k_wc, k_bc, k_w1, k_w2 = jax.random.split(key, 5)
    x = jax.random.normal(k_x, (B, C, Wd, Hd), dtype=jnp.float32)

    # Deterministic parameter init (shapes from SSEModule.__init__).
    wconv = jax.random.normal(k_wc, (1, C, 1, 1), dtype=jnp.float32) * 0.1  # Conv2d(C, 1, 1) weight
    bconv = jax.random.normal(k_bc, (1,), dtype=jnp.float32) * 0.1          # Conv2d bias
    w1 = jax.random.normal(k_w1, (hidden, HW), dtype=jnp.float32) * 0.05    # Linear(HxW, hidden, bias=False)
    w2 = jax.random.normal(k_w2, (HW, hidden), dtype=jnp.float32) * 0.05    # Linear(hidden, HxW, bias=False)

    out = sse_forward(x, wconv, bconv, w1, w2)
    out = jax.block_until_ready(out)

    ref = sse_reference(x, wconv, bconv, w1, w2)
    assert out.shape == (B, 1, Wd, Hd)
    assert jnp.allclose(out, ref, atol=2e-3, rtol=2e-3), "mismatch vs JAX reference"

    print("KERNEL_OK")
</pallas_src>

<mosaic_0001>
module attributes {stable_mosaic.version = 11 : i64} {
  func.func @_sse_kernel(%arg0: i32, %arg1: i32, %arg2: memref<4x2x256xbf16, #tpu.memory_space<vmem>>, %arg3: memref<4xf32, #tpu.memory_space<smem>>, %arg4: memref<1xf32, #tpu.memory_space<smem>>, %arg5: memref<256x128xbf16, #tpu.memory_space<vmem>>, %arg6: memref<128x256xbf16, #tpu.memory_space<vmem>>, %arg7: memref<2x256xf32, #tpu.memory_space<vmem>>, %arg8: memref<2x256xbf16, #tpu.memory_space<vmem>>, %arg9: memref<2x256xf32, #tpu.memory_space<vmem>>) attributes {dimension_semantics = [#tpu.dimension_semantics<parallel>, #tpu.dimension_semantics<arbitrary>], iteration_bounds = array<i64: 1, 1>, scalar_prefetch = 0 : i64, scratch_operands = 2 : i64, tpu.core_type = #tpu.core_type<tc>, window_params = [{transform_indices = @transform_0, window_bounds = array<i64: 4, 2, 256>}, {transform_indices = @transform_1, window_bounds = array<i64: 4>}, {transform_indices = @transform_2, window_bounds = array<i64: 1>}, {pipeline_mode = #tpu.pipeline_mode<synchronous>, transform_indices = @transform_3, window_bounds = array<i64: 256, 128>}, {pipeline_mode = #tpu.pipeline_mode<synchronous>, transform_indices = @transform_4, window_bounds = array<i64: 128, 256>}, {transform_indices = @transform_5, window_bounds = array<i64: 2, 256>}]} {
    %c0_i32 = arith.constant 0 : i32
    %0 = arith.cmpi eq, %arg1, %c0_i32 : i32
    %1 = arith.extui %0 : i1 to i32
    %c0_i32_0 = arith.constant 0 : i32
    %2 = arith.cmpi ne, %1, %c0_i32_0 : i32
    scf.if %2 {
      %c0_14 = arith.constant 0 : index
      %c0_15 = arith.constant 0 : index
      %c0_16 = arith.constant 0 : index
      %17 = vector.load %arg2[%c0_14, %c0_15, %c0_16] : memref<4x2x256xbf16, #tpu.memory_space<vmem>>, vector<1x2x256xbf16>
      %18 = vector.shape_cast %17 : vector<1x2x256xbf16> to vector<2x256xbf16>
      %19 = arith.extf %18 : vector<2x256xbf16> to vector<2x256xf32>
      %c0_17 = arith.constant 0 : index
      %20 = memref.load %arg3[%c0_17] : memref<4xf32, #tpu.memory_space<smem>>
      %21 = vector.broadcast %20 : f32 to vector<2x256xf32>
      %22 = arith.mulf %19, %21 : vector<2x256xf32>
      %c1 = arith.constant 1 : index
      %c0_18 = arith.constant 0 : index
      %c0_19 = arith.constant 0 : index
      %23 = vector.load %arg2[%c1, %c0_18, %c0_19] : memref<4x2x256xbf16, #tpu.memory_space<vmem>>, vector<1x2x256xbf16>
      %24 = vector.shape_cast %23 : vector<1x2x256xbf16> to vector<2x256xbf16>
      %25 = arith.extf %24 : vector<2x256xbf16> to vector<2x256xf32>
      %c1_20 = arith.constant 1 : index
      %26 = memref.load %arg3[%c1_20] : memref<4xf32, #tpu.memory_space<smem>>
      %27 = vector.broadcast %26 : f32 to vector<2x256xf32>
      %28 = arith.mulf %25, %27 : vector<2x256xf32>
      %29 = arith.addf %22, %28 : vector<2x256xf32>
      %c2 = arith.constant 2 : index
      %c0_21 = arith.constant 0 : index
      %c0_22 = arith.constant 0 : index
      %30 = vector.load %arg2[%c2, %c0_21, %c0_22] : memref<4x2x256xbf16, #tpu.memory_space<vmem>>, vector<1x2x256xbf16>
      %31 = vector.shape_cast %30 : vector<1x2x256xbf16> to vector<2x256xbf16>
      %32 = arith.extf %31 : vector<2x256xbf16> to vector<2x256xf32>
      %c2_23 = arith.constant 2 : index
      %33 = memref.load %arg3[%c2_23] : memref<4xf32, #tpu.memory_space<smem>>
      %34 = vector.broadcast %33 : f32 to vector<2x256xf32>
      %35 = arith.mulf %32, %34 : vector<2x256xf32>
      %36 = arith.addf %29, %35 : vector<2x256xf32>
      %c3 = arith.constant 3 : index
      %c0_24 = arith.constant 0 : index
      %c0_25 = arith.constant 0 : index
      %37 = vector.load %arg2[%c3, %c0_24, %c0_25] : memref<4x2x256xbf16, #tpu.memory_space<vmem>>, vector<1x2x256xbf16>
      %38 = vector.shape_cast %37 : vector<1x2x256xbf16> to vector<2x256xbf16>
      %39 = arith.extf %38 : vector<2x256xbf16> to vector<2x256xf32>
      %c3_26 = arith.constant 3 : index
      %40 = memref.load %arg3[%c3_26] : memref<4xf32, #tpu.memory_space<smem>>
      %41 = vector.broadcast %40 : f32 to vector<2x256xf32>
      %42 = arith.mulf %39, %41 : vector<2x256xf32>
      %43 = arith.addf %36, %42 : vector<2x256xf32>
      %c0_27 = arith.constant 0 : index
      %44 = memref.load %arg4[%c0_27] : memref<1xf32, #tpu.memory_space<smem>>
      %45 = vector.broadcast %44 : f32 to vector<2x256xf32>
      %46 = arith.addf %43, %45 : vector<2x256xf32>
      %47 = arith.truncf %46 : vector<2x256xf32> to vector<2x256xbf16>
      %c0_28 = arith.constant 0 : index
      %c0_29 = arith.constant 0 : index
      %48 = vector.load %arg8[%c0_28, %c0_29] : memref<2x256xbf16, #tpu.memory_space<vmem>>, vector<2x256xbf16>
      tpu.vector_store %arg8[%c0_28, %c0_29], %47 {strides = array<i32>} : memref<2x256xbf16, #tpu.memory_space<vmem>>, vector<2x256xbf16>,
      %cst_30 = arith.constant 0.000000e+00 : f32
      %49 = vector.broadcast %cst_30 : f32 to vector<2x256xf32>
      %c0_31 = arith.constant 0 : index
      %c0_32 = arith.constant 0 : index
      %50 = vector.load %arg9[%c0_31, %c0_32] : memref<2x256xf32, #tpu.memory_space<vmem>>, vector<2x256xf32>
      tpu.vector_store %arg9[%c0_31, %c0_32], %49 {strides = array<i32>} : memref<2x256xf32, #tpu.memory_space<vmem>>, vector<2x256xf32>,
    } else {
    }
    %c0 = arith.constant 0 : index
    %c0_1 = arith.constant 0 : index
    %3 = vector.load %arg8[%c0, %c0_1] : memref<2x256xbf16, #tpu.memory_space<vmem>>, vector<2x256xbf16>
    %c0_2 = arith.constant 0 : index
    %c0_3 = arith.constant 0 : index
    %4 = vector.load %arg5[%c0_2, %c0_3] : memref<256x128xbf16, #tpu.memory_space<vmem>>, vector<256x128xbf16>
    %cst = arith.constant dense<0.000000e+00> : vector<2x128xf32>
    %5 = tpu.matmul %3, %4, %cst {dimension_numbers = #tpu.dot_dimension_numbers<[1], [0], [0], [1], [0, 0, 1, 1], [], []>} : vector<2x256xbf16>, vector<256x128xbf16>, vector<2x128xf32> -> vector<2x128xf32>
    %cst_4 = arith.constant 0.000000e+00 : f32
    %6 = vector.broadcast %cst_4 : f32 to vector<2x128xf32>
    %7 = arith.maximumf %5, %6 : vector<2x128xf32>
    %8 = arith.truncf %7 : vector<2x128xf32> to vector<2x128xbf16>
    %c0_5 = arith.constant 0 : index
    %c0_6 = arith.constant 0 : index
    %9 = vector.load %arg9[%c0_5, %c0_6] : memref<2x256xf32, #tpu.memory_space<vmem>>, vector<2x256xf32>
    %c0_7 = arith.constant 0 : index
    %c0_8 = arith.constant 0 : index
    %10 = vector.load %arg6[%c0_7, %c0_8] : memref<128x256xbf16, #tpu.memory_space<vmem>>, vector<128x256xbf16>
    %cst_9 = arith.constant dense<0.000000e+00> : vector<2x256xf32>
    %11 = tpu.matmul %8, %10, %cst_9 {dimension_numbers = #tpu.dot_dimension_numbers<[1], [0], [0], [1], [0, 0, 1, 1], [], []>} : vector<2x128xbf16>, vector<128x256xbf16>, vector<2x256xf32> -> vector<2x256xf32>
    %12 = arith.addf %9, %11 : vector<2x256xf32>
    %c0_10 = arith.constant 0 : index
    %c0_11 = arith.constant 0 : index
    %13 = vector.load %arg9[%c0_10, %c0_11] : memref<2x256xf32, #tpu.memory_space<vmem>>, vector<2x256xf32>
    tpu.vector_store %arg9[%c0_10, %c0_11], %12 {strides = array<i32>} : memref<2x256xf32, #tpu.memory_space<vmem>>, vector<2x256xf32>,
    %c0_i32_12 = arith.constant 0 : i32
    %14 = arith.cmpi eq, %arg1, %c0_i32_12 : i32
    %15 = arith.extui %14 : i1 to i32
    %c0_i32_13 = arith.constant 0 : i32
    %16 = arith.cmpi ne, %15, %c0_i32_13 : i32
    scf.if %16 {
      %c0_14 = arith.constant 0 : index
      %c0_15 = arith.constant 0 : index
      %17 = vector.load %arg9[%c0_14, %c0_15] : memref<2x256xf32, #tpu.memory_space<vmem>>, vector<2x256xf32>
      %18 = arith.negf %17 : vector<2x256xf32>
      %19 = math.exp %18 : vector<2x256xf32>
      %cst_16 = arith.constant 1.000000e+00 : f32
      %20 = vector.broadcast %cst_16 : f32 to vector<2x256xf32>
      %21 = arith.addf %20, %19 : vector<2x256xf32>
      %22 = arith.divf %20, %21 : vector<2x256xf32>
      %c0_17 = arith.constant 0 : index
      %c0_18 = arith.constant 0 : index
      %23 = vector.load %arg7[%c0_17, %c0_18] : memref<2x256xf32, #tpu.memory_space<vmem>>, vector<2x256xf32>
      tpu.vector_store %arg7[%c0_17, %c0_18], %22 {strides = array<i32>} : memref<2x256xf32, #tpu.memory_space<vmem>>, vector<2x256xf32>,
    } else {
    }
    return
  }
  func.func @transform_0(%arg0: i32, %arg1: i32) -> (i32, i32, i32) {
    %c0_i32 = arith.constant 0 : i32
    %c0_i32_0 = arith.constant 0 : i32
    %c0_i32_1 = arith.constant 0 : i32
    return %c0_i32, %arg0, %c0_i32_0 : i32, i32, i32
  }
  func.func @transform_1(%arg0: i32, %arg1: i32) -> i32 {
    %c0_i32 = arith.constant 0 : i32
    %c0_i32_0 = arith.constant 0 : i32
    return %c0_i32 : i32
  }
  func.func @transform_2(%arg0: i32, %arg1: i32) -> i32 {
    %c0_i32 = arith.constant 0 : i32
    %c0_i32_0 = arith.constant 0 : i32
    return %c0_i32 : i32
  }
  func.func @transform_3(%arg0: i32, %arg1: i32) -> (i32, i32) {
    %c0_i32 = arith.constant 0 : i32
    %c0_i32_0 = arith.constant 0 : i32
    %c0_i32_1 = arith.constant 0 : i32
    return %c0_i32, %c0_i32_0 : i32, i32
  }
  func.func @transform_4(%arg0: i32, %arg1: i32) -> (i32, i32) {
    %c0_i32 = arith.constant 0 : i32
    %c0_i32_0 = arith.constant 0 : i32
    %c0_i32_1 = arith.constant 0 : i32
    return %c0_i32, %c0_i32_0 : i32, i32
  }
  func.func @transform_5(%arg0: i32, %arg1: i32) -> (i32, i32) {
    %c0_i32 = arith.constant 0 : i32
    %c0_i32_0 = arith.constant 0 : i32
    return %arg0, %c0_i32 : i32, i32
  }
}

</mosaic_0001>

<llo_original>
// kernel: tpu_custom_call.1
$region0: #{tpu_custom_call.1}
  #allocation0 [shape = 'u32[]', space=smem, size = 0x4, offset = 0x4, fixed_abs, tag = 'smem constant byte address 0x4 - core index']
  #allocation1 [shape = 'u32[72,128]{1,0:T(1,128)}', space=vmem, size = 0x9000, scoped, tag = 'internal scratch']
  #allocation2 [shape = 'bf16[2,256]{1,0:T(2,128)(2,1)}', space=vmem, size = 0x400, scoped, tag = 'scratch operand']
  #allocation3 [shape = 'f32[2,256]{1,0:T(2,128)}', space=vmem, size = 0x800, scoped, tag = 'scratch operand']
  #allocation4 [shape = 'f32[1]{0:T(128)S(6)}', space=smem, size = 0x200, scoped, tag = 'scoped memory for tpu_custom_call.1']
  %s0 = inlined_call_operand.hbm [shape: bf16[4,2,256], index: 0, kind: input, shape index: {}]
  %s1 = inlined_call_operand.vmem [shape: f32[4], index: 1, kind: input, shape index: {}]
  %s2 = inlined_call_operand.<no memory space> [shape: f32[1], index: 2, kind: input, shape index: {}]
  %s3 = inlined_call_operand.hbm [shape: bf16[256,128], index: 3, kind: input, shape index: {}]
  %s4 = inlined_call_operand.hbm [shape: bf16[128,256], index: 4, kind: input, shape index: {}]
  %s5 = inlined_call_operand.hbm [shape: f32[2,256], index: 5, kind: output, shape index: {}]
  %s6 = sld [smem:[#allocation0]]
  $region54: #{tpu_custom_call.1} parent=0
    _
  %s8 = ssub.s32 1, %s6
  %s9 = scalar_select 0, %s8, %s6
  %10 = sst [smem:[#allocation4]] %s2
  $region1: #{tpu_custom_call.1} parent=0
    #allocation5 [shape = 'u8[4096]{0}', space=vmem, size = 0x1000, scoped, tag = 'input window, operand 0, single buffered']
    #allocation6 [shape = 's32[1]{0}', space=sflag, size = 0x4, scoped, tag = 'scoped memory for tpu_custom_call.1']
    #allocation7 [shape = 's32[1]{0}', space=sflag, size = 0x4, scoped, tag = 'scoped memory for tpu_custom_call.1']
    #allocation8 [shape = 's32[1]{0}', space=sflag, size = 0x4, scoped, tag = 'scoped memory for tpu_custom_call.1']
    #allocation9 [shape = 'u8[512]{0}', space=smem, size = 0x200, scoped, tag = 'input window, operand 1, single buffered']
    #allocation10 [shape = 'u8[65536]{0}', space=vmem, size = 0x10000, scoped, tag = 'input window, operand 3, single buffered']
    #allocation11 [shape = 's32[1]{0}', space=sflag, size = 0x4, scoped, tag = 'scoped memory for tpu_custom_call.1']
    #allocation12 [shape = 'u8[65536]{0}', space=vmem, size = 0x10000, scoped, tag = 'input window, operand 4, single buffered']
    #allocation13 [shape = 'u8[2048]{0}', space=vmem, size = 0x800, scoped, tag = 'output window, operand 0, single buffered']
    %11 = vsyncpa [#allocation6], 0
    %12 = vsyncpa [#allocation8], 0
    %13 = vsyncpa [#allocation11], 0
    %14 = vsyncpa [#allocation7], 0
    // Predicated region
    $region2: #{tpu_custom_call.1} parent=1 // pred_check
      _
    $region3: #{tpu_custom_call.1} parent=1 // pred_check_branch
      %16 = sbr.rel (0) target = $region5
    $region4: #{tpu_custom_call.1} parent=1 // pred_region
      %18 = vsyncadd [#allocation6], 0
      %s19 = sshll.u32 %s0, 4
      %s20 = int_to_ptr.hbm [resolvable:$true] %s19
      %s21 = sshll.u32 [#allocation5], 4
      %s22 = int_to_ptr.vmem [resolvable:$true] %s21
      %27 = dma.hbm_to_vmem [thread:$0]  %s20, 128, %s22, [#allocation6], 32, 32, 2
    $region5: #{tpu_custom_call.1} parent=1 // pred_fallthru
      _
    // Predicated region
    $region6: #{tpu_custom_call.1} parent=1 // pred_check
      _
    $region7: #{tpu_custom_call.1} parent=1 // pred_check_branch
      %29 = sbr.rel (0) target = $region9
    $region8: #{tpu_custom_call.1} parent=1 // pred_region
      %31 = vsyncadd [#allocation8], 0
      %s33 = sshll.u32 %s1, 4
      %s34 = int_to_ptr.vmem [resolvable:$true] %s33
      %36 = dma.vmem_to_smem %s34, 16, [#allocation9], [#allocation8]
    $region9: #{tpu_custom_call.1} parent=1 // pred_fallthru
      _
    // Predicated region
    $region10: #{tpu_custom_call.1} parent=1 // pred_check
      _
    $region11: #{tpu_custom_call.1} parent=1 // pred_check_branch
      %38 = sbr.rel (0) target = $region13
    $region12: #{tpu_custom_call.1} parent=1 // pred_region
      _
    $region13: #{tpu_custom_call.1} parent=1 // pred_fallthru
      _
    // Predicated region
    $region14: #{tpu_custom_call.1} parent=1 // pred_check
      _
    $region15: #{tpu_custom_call.1} parent=1 // pred_check_branch
      %40 = sbr.rel (0) target = $region17
    $region16: #{tpu_custom_call.1} parent=1 // pred_region
      %42 = vsyncadd [#allocation11], 0
      %s43 = sshll.u32 %s3, 4
      %s44 = int_to_ptr.hbm [resolvable:$true] %s43
      %s45 = sshll.u32 [#allocation10], 4
      %s46 = int_to_ptr.vmem [resolvable:$true] %s45
      %51 = dma.hbm_to_vmem [thread:$0]  %s44, 2048, %s46, [#allocation11], 64, 64, 4
    $region17: #{tpu_custom_call.1} parent=1 // pred_fallthru
      _
    // Predicated region
    $region18: #{tpu_custom_call.1} parent=1 // pred_check
      _
    $region19: #{tpu_custom_call.1} parent=1 // pred_check_branch
      %53 = sbr.rel (0) target = $region21
    $region20: #{tpu_custom_call.1} parent=1 // pred_region
      %55 = vsyncadd [#allocation11], 0
      %s56 = sshll.u32 %s4, 4
      %s57 = int_to_ptr.hbm [resolvable:$true] %s56
      %s58 = sshll.u32 [#allocation12], 4
      %s59 = int_to_ptr.vmem [resolvable:$true] %s58
      %64 = dma.hbm_to_vmem [thread:$0]  %s57, 2048, %s59, [#allocation11], 128, 128, 8
    $region21: #{tpu_custom_call.1} parent=1 // pred_fallthru
      _
    // Predicated region
    $region22: #{tpu_custom_call.1} parent=1 // pred_check
      _
    $region23: #{tpu_custom_call.1} parent=1 // pred_check_branch
      %66 = sbr.rel (0) target = $region25
    $region24: #{tpu_custom_call.1} parent=1 // pred_region
      %68 = dma.done [#allocation6], 128
    $region25: #{tpu_custom_call.1} parent=1 // pred_fallthru
      _
    // Predicated region
    $region26: #{tpu_custom_call.1} parent=1 // pred_check
      _
    $region27: #{tpu_custom_call.1} parent=1 // pred_check_branch
      %70 = sbr.rel (0) target = $region29
    $region28: #{tpu_custom_call.1} parent=1 // pred_region
      %72 = dma.done [#allocation8], 16
    $region29: #{tpu_custom_call.1} parent=1 // pred_fallthru
      _
    // Predicated region
    $region30: #{tpu_custom_call.1} parent=1 // pred_check
      _
    $region31: #{tpu_custom_call.1} parent=1 // pred_check_branch
      %74 = sbr.rel (0) target = $region33
    $region32: #{tpu_custom_call.1} parent=1 // pred_region
      %76 = dma.done [#allocation11], 2048
    $region33: #{tpu_custom_call.1} parent=1 // pred_fallthru
      _
    // Predicated region
    $region34: #{tpu_custom_call.1} parent=1 // pred_check
      _
    $region35: #{tpu_custom_call.1} parent=1 // pred_check_branch
      %78 = sbr.rel (0) target = $region37
    $region36: #{tpu_custom_call.1} parent=1 // pred_region
      %80 = dma.done [#allocation11], 2048
    $region37: #{tpu_custom_call.1} parent=1 // pred_fallthru
      _
    %81 = sfence
    %p82 = scmp.eq.s32.totalorder 0, 0
    // Predicated region
    $region38: #{tpu_custom_call.1} parent=1 // pred_check
      %p83 = pneg %p82
    $region39: #{tpu_custom_call.1} parent=1 // pred_check_branch
      %85 = sbr.rel (%p83) target = $region41
    $region40: #{tpu_custom_call.1} parent=1 // pred_region
      %v86 = vld [vmem:[#allocation5] sm:$0x3]
      %v87 = vunpack.c.l.bf16 %v86
      %s88 = sld [smem:[#allocation9]]
      %v89 = vstv %s88
      %v90 = vmul.f32 %v87, %v89
      %s91 = scalar_lea.vmem [#allocation5], 2
      %v92 = vld [vmem:[%s91] sm:$0x3]
      %v93 = vunpack.c.l.bf16 %v92
      %s94 = sld [smem:[#allocation9 + $0x1]]
      %v95 = vstv %s94
      %v96 = vmul.f32 %v93, %v95
      %v97 = vadd.f32 %v90, %v96
      %s98 = scalar_lea.vmem [#allocation5], 4
      %v99 = vld [vmem:[%s98] sm:$0x3]
      %v100 = vunpack.c.l.bf16 %v99
      %s101 = sld [smem:[#allocation9 + $0x2]]
      %v102 = vstv %s101
      %v103 = vmul.f32 %v100, %v102
      %v104 = vadd.f32 %v97, %v103
      %s105 = scalar_lea.vmem [#allocation5], 6
      %v106 = vld [vmem:[%s105] sm:$0x3]
      %v107 = vunpack.c.l.bf16 %v106
      %s108 = sld [smem:[#allocation9 + $0x3]]
      %v109 = vstv %s108
      %v110 = vmul.f32 %v107, %v109
      %v111 = vadd.f32 %v104, %v110
      %s112 = sld [smem:[#allocation4]]
      %v113 = vstv %s112
      %v114 = vadd.f32 %v111, %v113
      %116 = vst [vmem:[#allocation1] ss:$4 sm:$0xff] %v114
      %v117 = vld.sshfl [vmem:[#allocation1] sm:$0xff pattern:$0x73625140]
      %v118 = vld.sshfl [vmem:[#allocation1 + $0x8] sm:$0xff pattern:$0x73625140]
      %v121 = vpack.c.bf16 %v118, %v117
      %v123 = vrot.slane %v121, 3
      %vm124 = vcmask 1040384
      %v127 = vsel %vm124, %v121, %v123
      %129 = vst [vmem:[#allocation2] sm:$0x3] %v127
      %130 = vst [vmem:[#allocation3] sm:$0xf] 0.0
    $region41: #{tpu_custom_call.1} parent=1 // pred_fallthru
      _
    %v131 = vld [vmem:[#allocation2] sm:$0x3]
    %v132 = vld [vmem:[#allocation10] sm:$0xf]
    %v133 = vld [vmem:[#allocation10 + $0x4] sm:$0xf]
    %v134 = vld [vmem:[#allocation10 + $0x8] sm:$0xf]
    %v135 = vld [vmem:[#allocation10 + $0xc] sm:$0xf]
    %v136 = vld [vmem:[#allocation10 + $0x10] sm:$0xf]
    %v137 = vld [vmem:[#allocation10 + $0x14] sm:$0xf]
    %v138 = vld [vmem:[#allocation10 + $0x18] sm:$0xf]
    %v139 = vld [vmem:[#allocation10 + $0x1c] sm:$0xf]
    %v140 = vld [vmem:[#allocation10 + $0x20] sm:$0xf]
    %v141 = vld [vmem:[#allocation10 + $0x24] sm:$0xf]
    %v142 = vld [vmem:[#allocation10 + $0x28] sm:$0xf]
    %v143 = vld [vmem:[#allocation10 + $0x2c] sm:$0xf]
    %v144 = vld [vmem:[#allocation10 + $0x30] sm:$0xf]
    %v145 = vld [vmem:[#allocation10 + $0x34] sm:$0xf]
    %v146 = vld [vmem:[#allocation10 + $0x38] sm:$0xf]
    %v147 = vld [vmem:[#allocation10 + $0x3c] sm:$0xf]
    %v148 = vld [vmem:[#allocation10 + $0x40] sm:$0xf]
    %v149 = vld [vmem:[#allocation10 + $0x44] sm:$0xf]
    %v150 = vld [vmem:[#allocation10 + $0x48] sm:$0xf]
    %v151 = vld [vmem:[#allocation10 + $0x4c] sm:$0xf]
    %v152 = vld [vmem:[#allocation10 + $0x50] sm:$0xf]
    %v153 = vld [vmem:[#allocation10 + $0x54] sm:$0xf]
    %v154 = vld [vmem:[#allocation10 + $0x58] sm:$0xf]
    %v155 = vld [vmem:[#allocation10 + $0x5c] sm:$0xf]
    %v156 = vld [vmem:[#allocation10 + $0x60] sm:$0xf]
    %v157 = vld [vmem:[#allocation10 + $0x64] sm:$0xf]
    %v158 = vld [vmem:[#allocation10 + $0x68] sm:$0xf]
    %v159 = vld [vmem:[#allocation10 + $0x6c] sm:$0xf]
    %v160 = vld [vmem:[#allocation10 + $0x70] sm:$0xf]
    %v161 = vld [vmem:[#allocation10 + $0x74] sm:$0xf]
    %v162 = vld [vmem:[#allocation10 + $0x78] sm:$0xf]
    %v163 = vld [vmem:[#allocation10 + $0x7c] sm:$0xf]
    %165 = vst [vmem:[#allocation1] ss:$9 sm:$0xff] %v131
    %v166 = vld [vmem:[#allocation1] sm:$0xff]
    %v167 = vld [vmem:[#allocation1 + $0x9] sm:$0xff]
    %v202 = vunpack.c.l.b16 %v132
    %v203 = vunpack.c.l.b16 %v133
    %v204 = vunpack.c.l.b16 %v134
    %v205 = vunpack.c.l.b16 %v135
    %v206 = vunpack.c.l.b16 %v136
    %v207 = vunpack.c.l.b16 %v137
    %v208 = vunpack.c.l.b16 %v138
    %v209 = vunpack.c.l.b16 %v139
    %v210 = vunpack.c.l.b16 %v140
    %v211 = vunpack.c.l.b16 %v141
    %v212 = vunpack.c.l.b16 %v142
    %v213 = vunpack.c.l.b16 %v143
    %v214 = vunpack.c.l.b16 %v144
    %v215 = vunpack.c.l.b16 %v145
    %v216 = vunpack.c.l.b16 %v146
    %v217 = vunpack.c.l.b16 %v147
    %v218 = vunpack.c.l.b16 %v148
    %v219 = vunpack.c.l.b16 %v149
    %v220 = vunpack.c.l.b16 %v150
    %v221 = vunpack.c.l.b16 %v151
    %v222 = vunpack.c.l.b16 %v152
    %v223 = vunpack.c.l.b16 %v153
    %v224 = vunpack.c.l.b16 %v154
    %v225 = vunpack.c.l.b16 %v155
    %v226 = vunpack.c.l.b16 %v156
    %v227 = vunpack.c.l.b16 %v157
    %v228 = vunpack.c.l.b16 %v158
    %v229 = vunpack.c.l.b16 %v159
    %v230 = vunpack.c.l.b16 %v160
    %v231 = vunpack.c.l.b16 %v161
    %v232 = vunpack.c.l.b16 %v162
    %v233 = vunpack.c.l.b16 %v163
    %v234 = vpack.c.b16 %v203, %v202
    %v235 = vpack.c.b16 %v205, %v204
    %v236 = vpack.c.b16 %v207, %v206
    %v237 = vpack.c.b16 %v209, %v208
    %v238 = vpack.c.b16 %v211, %v210
    %v239 = vpack.c.b16 %v213, %v212
    %v240 = vpack.c.b16 %v215, %v214
    %v241 = vpack.c.b16 %v217, %v216
    %v242 = vpack.c.b16 %v219, %v218
    %v243 = vpack.c.b16 %v221, %v220
    %v244 = vpack.c.b16 %v223, %v222
    %v245 = vpack.c.b16 %v225, %v224
    %v246 = vpack.c.b16 %v227, %v226
    %v247 = vpack.c.b16 %v229, %v228
    %v248 = vpack.c.b16 %v231, %v230
    %v249 = vpack.c.b16 %v233, %v232
    %266 = vmatpush.bf16.msra.mxu0 %v241
    %267 = vmatpush.bf16.msra.mxu0 %v240
    %268 = vmatpush.bf16.msra.mxu0 %v239
    %269 = vmatpush.bf16.msra.mxu0 %v238
    %270 = vmatpush.bf16.msra.mxu0 %v237
    %271 = vmatpush.bf16.msra.mxu0 %v236
    %272 = vmatpush.bf16.msra.mxu0 %v235
    %273 = vmatpush.bf16.msra.mxu0 %v234
    %274 = vmatmul.bf16.gmra.mxu0 %v166
    %v275 = vpop.f32.mrf.mxu0
    %v276 = vadd.f32 0.0, %v275
    %v277 = vpop.f32.mrf.mxu0
    %278 = vdwg.mxu0
    %279 = vmatpush.bf16.msra.mxu0 %v249
    %280 = vmatpush.bf16.msra.mxu0 %v248
    %281 = vmatpush.bf16.msra.mxu0 %v247
    %282 = vmatpush.bf16.msra.mxu0 %v246
    %283 = vmatpush.bf16.msra.mxu0 %v245
    %284 = vmatpush.bf16.msra.mxu0 %v244
    %285 = vmatpush.bf16.msra.mxu0 %v243
    %286 = vmatpush.bf16.msra.mxu0 %v242
    %287 = vmatmul.bf16.gmra.mxu0 %v167
    %v288 = vpop.f32.mrf.mxu0
    %v289 = vadd.f32 %v276, %v288
    %v290 = vpop.f32.mrf.mxu0
    %291 = vdwg.mxu0
    %v292 = vmax.f32 %v289, 0.0
    %v293 = vpack.c.bf16 %v292, %v292
    %v294 = vld [vmem:[#allocation3] sm:$0xf]
    %v295 = vld [vmem:[#allocation12] sm:$0xff]
    %v296 = vld [vmem:[#allocation12 + $0x8] sm:$0xff]
    %v297 = vld [vmem:[#allocation12 + $0x10] sm:$0xff]
    %v298 = vld [vmem:[#allocation12 + $0x18] sm:$0xff]
    %v299 = vld [vmem:[#allocation12 + $0x20] sm:$0xff]
    %v300 = vld [vmem:[#allocation12 + $0x28] sm:$0xff]
    %v301 = vld [vmem:[#allocation12 + $0x30] sm:$0xff]
    %v302 = vld [vmem:[#allocation12 + $0x38] sm:$0xff]
    %v303 = vld [vmem:[#allocation12 + $0x40] sm:$0xff]
    %v304 = vld [vmem:[#allocation12 + $0x48] sm:$0xff]
    %v305 = vld [vmem:[#allocation12 + $0x50] sm:$0xff]
    %v306 = vld [vmem:[#allocation12 + $0x58] sm:$0xff]
    %v307 = vld [vmem:[#allocation12 + $0x60] sm:$0xff]
    %v308 = vld [vmem:[#allocation12 + $0x68] sm:$0xff]
    %v309 = vld [vmem:[#allocation12 + $0x70] sm:$0xff]
    %v310 = vld [vmem:[#allocation12 + $0x78] sm:$0xff]
    %v327 = vunpack.c.l.b16 %v295
    %v328 = vunpack.c.h.b16 %v295
    %v329 = vunpack.c.l.b16 %v296
    %v330 = vunpack.c.h.b16 %v296
    %v331 = vunpack.c.l.b16 %v297
    %v332 = vunpack.c.h.b16 %v297
    %v333 = vunpack.c.l.b16 %v298
    %v334 = vunpack.c.h.b16 %v298
    %v335 = vunpack.c.l.b16 %v299
    %v336 = vunpack.c.h.b16 %v299
    %v337 = vunpack.c.l.b16 %v300
    %v338 = vunpack.c.h.b16 %v300
    %v339 = vunpack.c.l.b16 %v301
    %v340 = vunpack.c.h.b16 %v301
    %v341 = vunpack.c.l.b16 %v302
    %v342 = vunpack.c.h.b16 %v302
    %v343 = vunpack.c.l.b16 %v303
    %v344 = vunpack.c.h.b16 %v303
    %v345 = vunpack.c.l.b16 %v304
    %v346 = vunpack.c.h.b16 %v304
    %v347 = vunpack.c.l.b16 %v305
    %v348 = vunpack.c.h.b16 %v305
    %v349 = vunpack.c.l.b16 %v306
    %v350 = vunpack.c.h.b16 %v306
    %v351 = vunpack.c.l.b16 %v307
    %v352 = vunpack.c.h.b16 %v307
    %v353 = vunpack.c.l.b16 %v308
    %v354 = vunpack.c.h.b16 %v308
    %v355 = vunpack.c.l.b16 %v309
    %v356 = vunpack.c.h.b16 %v309
    %v357 = vunpack.c.l.b16 %v310
    %v358 = vunpack.c.h.b16 %v310
    %v359 = vpack.c.b16 %v329, %v327
    %v360 = vpack.c.b16 %v330, %v328
    %v361 = vpack.c.b16 %v333, %v331
    %v362 = vpack.c.b16 %v334, %v332
    %v363 = vpack.c.b16 %v337, %v335
    %v364 = vpack.c.b16 %v338, %v336
    %v365 = vpack.c.b16 %v341, %v339
    %v366 = vpack.c.b16 %v342, %v340
    %v367 = vpack.c.b16 %v345, %v343
    %v368 = vpack.c.b16 %v346, %v344
    %v369 = vpack.c.b16 %v349, %v347
    %v370 = vpack.c.b16 %v350, %v348
    %v371 = vpack.c.b16 %v353, %v351
    %v372 = vpack.c.b16 %v354, %v352
    %v373 = vpack.c.b16 %v357, %v355
    %v374 = vpack.c.b16 %v358, %v356
    %391 = vmatpush.bf16.msra.mxu0 %v373
    %392 = vmatpush.bf16.msra.mxu0 %v371
    %393 = vmatpush.bf16.msra.mxu0 %v369
    %394 = vmatpush.bf16.msra.mxu0 %v367
    %395 = vmatpush.bf16.msra.mxu0 %v365
    %396 = vmatpush.bf16.msra.mxu0 %v363
    %397 = vmatpush.bf16.msra.mxu0 %v361
    %398 = vmatpush.bf16.msra.mxu0 %v359
    %399 = vmatmul.bf16.gmra.mxu0 %v293
    %v400 = vpop.f32.mrf.mxu0
    %v401 = vadd.f32 0.0, %v400
    %v402 = vpop.f32.mrf.mxu0
    %403 = vdwg.mxu0
    %404 = vmatpush.bf16.msra.mxu0 %v374
    %405 = vmatpush.bf16.msra.mxu0 %v372
    %406 = vmatpush.bf16.msra.mxu0 %v370
    %407 = vmatpush.bf16.msra.mxu0 %v368
    %408 = vmatpush.bf16.msra.mxu0 %v366
    %409 = vmatpush.bf16.msra.mxu0 %v364
    %410 = vmatpush.bf16.msra.mxu0 %v362
    %411 = vmatpush.bf16.msra.mxu0 %v360
    %412 = vmatmul.bf16.gmra.mxu0 %v293
    %v413 = vpop.f32.mrf.mxu0
    %v414 = vadd.f32 0.0, %v413
    %v415 = vpop.f32.mrf.mxu0
    %416 = vdwg.mxu0
    %v419 = vrot.slane %v414, 6
    %vm420 = vcmask 1041408
    %v421 = vsel %vm420, %v401, %v419
    %v423 = vadd.f32 %v294, %v421
    %424 = vst [vmem:[#allocation3] sm:$0xf] %v423
    // Predicated region
    $region42: #{tpu_custom_call.1} parent=1 // pred_check
      %p425 = pneg %p82
    $region43: #{tpu_custom_call.1} parent=1 // pred_check_branch
      %427 = sbr.rel (%p425) target = $region45
    $region44: #{tpu_custom_call.1} parent=1 // pred_region
      %v428 = vld [vmem:[#allocation3] sm:$0xf]
      %v429 = vxor.u32 %v428, 2147483648
      %v430 = vmul.f32 %v429, 1.442695
      %v431 = vpow.pop %v430
      %v432 = vadd.f32 %v431, 1.0
      %v433 = vrcp.pop %v432
      %v434 = vmul.f32 %v432, %v433
      %v435 = vsub.f32 1.0, %v434
      %v436 = vmul.f32 %v433, %v435
      %v437 = vadd.f32 %v433, %v436
      %vm438 = vweird.f32 %v432
      %vm439 = vweird.f32 %v433
      %vm440 = vmor %vm438, %vm439
      %v441 = vsel %vm440, %v433, %v437
      %v442 = vand.u32 2147483647, %v432
      %vm443 = vcmp.eq.f32.partialorder %v442, 8.507059e+37
      %v444 = vand.u32 %v432, 2147483648
      %v445 = vor.u32 1.1754944e-38, %v444
      %v446 = vsel %vm443, %v445, %v441
      %v447 = vmul.f32 1.0, %v446
      %448 = vst [vmem:[#allocation13] sm:$0xf] %v447
    $region45: #{tpu_custom_call.1} parent=1 // pred_fallthru
      _
    // Predicated region
    $region46: #{tpu_custom_call.1} parent=1 // pred_check
      _
    $region47: #{tpu_custom_call.1} parent=1 // pred_check_branch
      %450 = sbr.rel (0) target = $region49
    $region48: #{tpu_custom_call.1} parent=1 // pred_region
      %452 = vsyncadd [#allocation7], 0
      %s454 = sshll.u32 [#allocation13], 4
      %s455 = int_to_ptr.vmem [resolvable:$true] %s454
      %s456 = sshll.u32 %s5, 4
      %s457 = int_to_ptr.hbm [resolvable:$true] %s456
      %459 = dma.vmem_to_hbm [thread:$0]  %s455, 64, %s457, [#allocation7]
    $region49: #{tpu_custom_call.1} parent=1 // pred_fallthru
      _
    // Predicated region
    $region50: #{tpu_custom_call.1} parent=1 // pred_check
      _
    $region51: #{tpu_custom_call.1} parent=1 // pred_check_branch
      %461 = sbr.rel (0) target = $region53
    $region52: #{tpu_custom_call.1} parent=1 // pred_region
      %463 = dma.done [#allocation7], 64
    $region53: #{tpu_custom_call.1} parent=1 // pred_fallthru
      _
    %464 = vsyncpa [#allocation6], 1
    %465 = vsyncpa [#allocation11], 1
    %466 = vsyncpa [#allocation7], 1
    %467 = vsyncpa [#allocation8], 1

</llo_original>
